<compile_context>
chip_gen: v7x
topology: tpu7x:2x2x1
jax: 0.10.0
libtpu: 0.0.40
codegen_flags: <defaults>
</compile_context>

<pallas_src>
import functools

import jax
import jax.numpy as jnp
from jax.experimental import pallas as pl
from jax.experimental.pallas import tpu as pltpu


def nl_block_kernel(x_ref, wqkv_ref, bqkv_ref, wz_ref, scale_ref, shift_ref,
                    out_ref, *, b_tile, ci):
    # Resident weights: cast to bf16 once per grid step (hoisted out of the
    # per-batch-element loop).
    wqkv_bf = wqkv_ref[...].astype(jnp.bfloat16)     # (3Ci+1, C)
    bqkv = bqkv_ref[...]                             # (3Ci+1, 1) f32
    wz_bf = wz_ref[...].astype(jnp.bfloat16)         # (C, Ci)
    scale = scale_ref[...]                           # (C, 1)
    shift = shift_ref[...]                           # (C, 1)

    for b in range(b_tile):
        x = x_ref[b]                                 # (C, HW) f32
        x_bf = x.astype(jnp.bfloat16)

        # Fused 1x1 convs (channel matmul), channels-first.  Row 3*Ci of the
        # fused weight is all-zero with bias 1 -> an exact ones row used later
        # to produce the softmax denominator for free.
        proj = jnp.dot(wqkv_bf, x_bf,
                       preferred_element_type=jnp.float32) + bqkv   # (3Ci+1, HW)
        theta = proj[0:ci]                            # (Ci, HW)
        phi = proj[ci:2 * ci]                         # (Ci, HW)
        g_aug = proj[2 * ci:3 * ci + 1]               # (Ci+1, HW), last row == 1

        # Embedded-Gaussian pairwise: f[i, j] = theta[:, i] . phi[:, j].
        f = jax.lax.dot_general(theta.astype(jnp.bfloat16),
                                phi.astype(jnp.bfloat16),
                                dimension_numbers=(((0,), (0,)), ((), ())),
                                preferred_element_type=jnp.float32)  # (HW, HW)

        # Numerically-stabilized exp; normalization deferred past the value
        # matmul (softmax denominator appears as the last row of yt_aug).
        m = jnp.max(f, axis=-1, keepdims=True)        # (HW, 1)
        s = jnp.exp(f - m)                            # (HW, HW)

        yt_aug = jax.lax.dot_general(g_aug.astype(jnp.bfloat16),
                                     s.astype(jnp.bfloat16),
                                     dimension_numbers=(((1,), (1,)), ((), ())),
                                     preferred_element_type=jnp.float32)  # (Ci+1, HW)
        inv_r = pl.reciprocal(yt_aug[ci:ci + 1], approx=True)  # (1, HW)
        yt = yt_aug[0:ci] * inv_r                               # (Ci, HW)

        # W_z 1x1 conv + fused (conv-bias, g-bias, BatchNorm) FMA + residual.
        wy = jnp.dot(wz_bf, yt.astype(jnp.bfloat16),
                     preferred_element_type=jnp.float32)        # (C, HW)
        out_ref[b] = wy * scale + shift + x


def _pick_b_tile(n, c, hw):
    """Batch elements per grid step: big enough to amortize per-step overhead,
    small enough to fit VMEM, and (when possible) >= 2 grid steps for v7x."""
    per_elem = 3 * hw * hw * 4 + 8 * c * hw * 4       # f/s intermediates + acts
    cap = max(1, int((24 << 20) // max(per_elem, 1)))
    cap = min(cap, 8)
    upper = min(cap, max(n // 2, 1))                  # keep >= 2 grid steps
    for bt in range(upper, 0, -1):
        if n % bt == 0:
            return bt
    return 1


def nl_block_forward(x, params, eps=1e-5):
    """x: (N, C, H, W) float32 -> (N, C, H, W) float32 (embedded mode, BN eval)."""
    N, C, H, W = x.shape
    HW = H * W
    Ci = params["w_theta"].shape[0]

    # Channels-first flat layout: no transposes, lanes carry HW.
    x_flat = x.reshape(N, C, HW)

    # Fold W_z conv bias, the g conv bias (softmax rows sum to 1, so
    # p @ (Wg x + bg) = p @ (Wg x) + bg), and inference BatchNorm into a single
    # per-channel scale/shift FMA:
    #   out = (Wz @ y_nobias) * scale + shift + x
    bn_scale = params["bn_gamma"] / jnp.sqrt(params["bn_var"] + eps)
    shift = params["bn_beta"] + (params["b_wz"]
                                 + params["w_wz"] @ params["b_g"]
                                 - params["bn_mean"]) * bn_scale

    # Fused QKV projection weights + an extra all-zero row whose bias is 1 so
    # the value matmul also emits the softmax row-sums (denominator).
    w_qkv = jnp.concatenate(
        [params["w_theta"], params["w_phi"], params["w_g"],
         jnp.zeros((1, C), jnp.float32)], axis=0)                    # (3Ci+1, C)
    b_qkv = jnp.concatenate(
        [params["b_theta"], params["b_phi"],
         jnp.zeros((Ci,), jnp.float32), jnp.ones((1,), jnp.float32)])[:, None]

    args = (x_flat,
            w_qkv, b_qkv,
            params["w_wz"],
            bn_scale[:, None], shift[:, None])

    B_TILE = _pick_b_tile(N, C, HW)
    grid = (N // B_TILE,)

    # Scoped-VMEM budget: 2x double-buffered in/out blocks + per-element
    # intermediates, with headroom; clamp to stay within v7x's 64 MiB physical.
    per_elem = 3 * HW * HW * 4 + 8 * C * HW * 4
    needed = 4 * B_TILE * C * HW * 4 + B_TILE * per_elem + 16 * w_qkv.size * 4
    vmem_limit = int(min(max(2 * needed, 32 << 20), 56 << 20))

    def resident(a):
        # Weight / bias stays in the same VMEM block for every grid step.
        return pl.BlockSpec(a.shape, lambda n: (0,) * a.ndim)

    grid_spec = pltpu.PrefetchScalarGridSpec(
        num_scalar_prefetch=0,
        grid=grid,
        in_specs=[pl.BlockSpec((B_TILE, C, HW), lambda n: (n, 0, 0))]
                 + [resident(a) for a in args[1:]],
        out_specs=pl.BlockSpec((B_TILE, C, HW), lambda n: (n, 0, 0)),
    )

    kernel = functools.partial(nl_block_kernel, b_tile=B_TILE, ci=Ci)
    out_flat = pl.pallas_call(
        kernel,
        out_shape=jax.ShapeDtypeStruct((N, C, HW), jnp.float32),
        grid_spec=grid_spec,
        compiler_params=pltpu.CompilerParams(
            dimension_semantics=("parallel",),
            vmem_limit_bytes=vmem_limit),
    )(*args)

    return out_flat.reshape(N, C, H, W)


def init_params(key, in_channels):
    """Conv weights: PyTorch-style U(-1/sqrt(fan_in), 1/sqrt(fan_in)).

    The PyTorch module initializes the W_z BatchNorm weight/bias to 0 (so
    z == x at init); here the BN parameters are random so the correctness
    check exercises the whole attention path, and the spec-init identity case
    is asserted separately in __main__.
    """
    C = in_channels
    Ci = max(C // 2, 1)
    keys = jax.random.split(key, 12)

    def u(k, shape, fan_in):
        b = 1.0 / float(fan_in) ** 0.5
        return jax.random.uniform(k, shape, jnp.float32, -b, b)

    return {
        "w_theta": u(keys[0], (Ci, C), C), "b_theta": u(keys[1], (Ci,), C),
        "w_phi": u(keys[2], (Ci, C), C), "b_phi": u(keys[3], (Ci,), C),
        "w_g": u(keys[4], (Ci, C), C), "b_g": u(keys[5], (Ci,), C),
        "w_wz": u(keys[6], (C, Ci), Ci), "b_wz": u(keys[7], (C,), Ci),
        "bn_gamma": jax.random.uniform(keys[8], (C,), jnp.float32, 0.5, 1.5),
        "bn_beta": 0.1 * jax.random.normal(keys[9], (C,), jnp.float32),
        "bn_mean": 0.1 * jax.random.normal(keys[10], (C,), jnp.float32),
        "bn_var": jax.random.uniform(keys[11], (C,), jnp.float32, 0.5, 1.5),
    }


def reference_forward(x, params, eps=1e-5):
    """Pure-JAX reference matching the PyTorch forward (embedded mode, eval BN),
    with HIGHEST-precision matmuls so it is a trustworthy f32 baseline."""
    N, C, H, W = x.shape
    xf = x.reshape(N, C, H * W)
    hp = jax.lax.Precision.HIGHEST

    def conv1x1(w, b, inp):  # w: (out, in), inp: (N, in, HW)
        return jnp.einsum("oi,niL->noL", w, inp, precision=hp) + b[None, :, None]

    g_x = conv1x1(params["w_g"], params["b_g"], xf)             # (N, Ci, HW)
    th = conv1x1(params["w_theta"], params["b_theta"], xf)      # (N, Ci, HW)
    ph = conv1x1(params["w_phi"], params["b_phi"], xf)          # (N, Ci, HW)

    f = jnp.einsum("ncl,ncm->nlm", th, ph, precision=hp)        # (N, HW, HW)
    p = jax.nn.softmax(f, axis=-1)
    y = jnp.einsum("nlm,ncm->nlc", p, g_x, precision=hp)        # (N, HW, Ci)
    y = jnp.transpose(y, (0, 2, 1))                             # (N, Ci, HW)

    wy = conv1x1(params["w_wz"], params["b_wz"], y)             # (N, C, HW)
    scale = (params["bn_gamma"] / jnp.sqrt(params["bn_var"] + eps))[None, :, None]
    wy_bn = (wy - params["bn_mean"][None, :, None]) * scale + params["bn_beta"][None, :, None]
    return (wy_bn + xf).reshape(N, C, H, W)


if __name__ == "__main__":
    # Small shapes consistent with the module: dimension=2, x = (N, C, H, W),
    # inter_channels = C // 2, HW = 256 (lane-dense).
    N, C, H, W = 2, 32, 16, 16

    key = jax.random.PRNGKey(0)
    kx, kp = jax.random.split(key)
    x = jax.random.normal(kx, (N, C, H, W), jnp.float32)
    params = init_params(kp, C)

    # 1) Full path with random (non-degenerate) BatchNorm parameters.  The
    #    kernel uses bf16 MXU operands + an approximate reciprocal, so compare
    #    against the f32 reference with a correspondingly relaxed tolerance.
    out = nl_block_forward(x, params)
    out = jax.block_until_ready(out)
    ref = reference_forward(x, params)
    assert out.shape == (N, C, H, W)
    err = float(jnp.max(jnp.abs(out - ref)))
    assert jnp.allclose(out, ref, atol=5e-2, rtol=5e-2), f"max abs err = {err}"

    # 2) PyTorch spec-init (BN gamma = beta = 0, default running stats):
    #    the block must reduce exactly to the identity residual, z == x.
    params_init = dict(params)
    params_init["bn_gamma"] = jnp.zeros((C,), jnp.float32)
    params_init["bn_beta"] = jnp.zeros((C,), jnp.float32)
    params_init["bn_mean"] = jnp.zeros((C,), jnp.float32)
    params_init["bn_var"] = jnp.ones((C,), jnp.float32)
    out_id = jax.block_until_ready(nl_block_forward(x, params_init))
    assert jnp.allclose(out_id, x, atol=1e-6), "spec-init residual identity failed"

    print("KERNEL_OK")
</pallas_src>

<mosaic_0001>
module attributes {stable_mosaic.version = 11 : i64} {
  func.func @nl_block_kernel(%arg0: i32, %arg1: memref<1x32x256xf32, #tpu.memory_space<vmem>>, %arg2: memref<49x32xf32, #tpu.memory_space<vmem>>, %arg3: memref<49x1xf32, #tpu.memory_space<vmem>>, %arg4: memref<32x16xf32, #tpu.memory_space<vmem>>, %arg5: memref<32x1xf32, #tpu.memory_space<vmem>>, %arg6: memref<32x1xf32, #tpu.memory_space<vmem>>, %arg7: memref<1x32x256xf32, #tpu.memory_space<vmem>>) attributes {dimension_semantics = [#tpu.dimension_semantics<parallel>], iteration_bounds = array<i64: 2>, scalar_prefetch = 0 : i64, scratch_operands = 0 : i64, tpu.core_type = #tpu.core_type<tc>, window_params = [{transform_indices = @transform_0, window_bounds = array<i64: 1, 32, 256>}, {pipeline_mode = #tpu.pipeline_mode<synchronous>, transform_indices = @transform_1, window_bounds = array<i64: 49, 32>}, {pipeline_mode = #tpu.pipeline_mode<synchronous>, transform_indices = @transform_2, window_bounds = array<i64: 49, 1>}, {pipeline_mode = #tpu.pipeline_mode<synchronous>, transform_indices = @transform_3, window_bounds = array<i64: 32, 16>}, {pipeline_mode = #tpu.pipeline_mode<synchronous>, transform_indices = @transform_4, window_bounds = array<i64: 32, 1>}, {pipeline_mode = #tpu.pipeline_mode<synchronous>, transform_indices = @transform_5, window_bounds = array<i64: 32, 1>}, {transform_indices = @transform_6, window_bounds = array<i64: 1, 32, 256>}]} {
    %c0 = arith.constant 0 : index
    %c0_0 = arith.constant 0 : index
    %0 = vector.load %arg2[%c0, %c0_0] : memref<49x32xf32, #tpu.memory_space<vmem>>, vector<49x32xf32>
    %1 = arith.truncf %0 : vector<49x32xf32> to vector<49x32xbf16>
    %c0_1 = arith.constant 0 : index
    %c0_2 = arith.constant 0 : index
    %2 = vector.load %arg3[%c0_1, %c0_2] : memref<49x1xf32, #tpu.memory_space<vmem>>, vector<49x1xf32>
    %c0_3 = arith.constant 0 : index
    %c0_4 = arith.constant 0 : index
    %3 = vector.load %arg4[%c0_3, %c0_4] : memref<32x16xf32, #tpu.memory_space<vmem>>, vector<32x16xf32>
    %4 = arith.truncf %3 : vector<32x16xf32> to vector<32x16xbf16>
    %c0_5 = arith.constant 0 : index
    %c0_6 = arith.constant 0 : index
    %5 = vector.load %arg5[%c0_5, %c0_6] : memref<32x1xf32, #tpu.memory_space<vmem>>, vector<32x1xf32>
    %c0_7 = arith.constant 0 : index
    %c0_8 = arith.constant 0 : index
    %6 = vector.load %arg6[%c0_7, %c0_8] : memref<32x1xf32, #tpu.memory_space<vmem>>, vector<32x1xf32>
    %c0_9 = arith.constant 0 : index
    %c0_10 = arith.constant 0 : index
    %c0_11 = arith.constant 0 : index
    %7 = vector.load %arg1[%c0_9, %c0_10, %c0_11] : memref<1x32x256xf32, #tpu.memory_space<vmem>>, vector<1x32x256xf32>
    %8 = vector.shape_cast %7 : vector<1x32x256xf32> to vector<32x256xf32>
    %9 = arith.truncf %8 : vector<32x256xf32> to vector<32x256xbf16>
    %cst = arith.constant dense<0.000000e+00> : vector<49x256xf32>
    %10 = tpu.matmul %1, %9, %cst {dimension_numbers = #tpu.dot_dimension_numbers<[1], [0], [0], [1], [0, 0, 1, 1], [], []>} : vector<49x32xbf16>, vector<32x256xbf16>, vector<49x256xf32> -> vector<49x256xf32>
    %11 = vector.broadcast %2 : vector<49x1xf32> to vector<49x256xf32>
    %12 = arith.addf %10, %11 : vector<49x256xf32>
    %13 = vector.extract_strided_slice %12 {offsets = [0, 0], sizes = [16, 256], strides = [1, 1]} : vector<49x256xf32> to vector<16x256xf32>
    %14 = vector.extract_strided_slice %12 {offsets = [16, 0], sizes = [16, 256], strides = [1, 1]} : vector<49x256xf32> to vector<16x256xf32>
    %15 = vector.extract_strided_slice %12 {offsets = [32, 0], sizes = [17, 256], strides = [1, 1]} : vector<49x256xf32> to vector<17x256xf32>
    %16 = arith.truncf %13 : vector<16x256xf32> to vector<16x256xbf16>
    %17 = arith.truncf %14 : vector<16x256xf32> to vector<16x256xbf16>
    %cst_12 = arith.constant dense<0.000000e+00> : vector<256x256xf32>
    %18 = tpu.matmul %16, %17, %cst_12 {dimension_numbers = #tpu.dot_dimension_numbers<[0], [0], [1], [1], [0, 1, 1, 1], [], []>} : vector<16x256xbf16>, vector<16x256xbf16>, vector<256x256xf32> -> vector<256x256xf32>
    %cst_13 = arith.constant dense<0xFF800000> : vector<256xf32>
    %19 = vector.multi_reduction <maximumf>, %18, %cst_13 [1] : vector<256x256xf32> to vector<256xf32>
    %20 = vector.shape_cast %19 : vector<256xf32> to vector<256x1xf32>
    %21 = vector.broadcast %20 : vector<256x1xf32> to vector<256x256xf32>
    %22 = arith.subf %18, %21 : vector<256x256xf32>
    %23 = math.exp %22 : vector<256x256xf32>
    %24 = arith.truncf %15 : vector<17x256xf32> to vector<17x256xbf16>
    %25 = arith.truncf %23 : vector<256x256xf32> to vector<256x256xbf16>
    %cst_14 = arith.constant dense<0.000000e+00> : vector<17x256xf32>
    %26 = tpu.matmul %24, %25, %cst_14 {dimension_numbers = #tpu.dot_dimension_numbers<[1], [1], [0], [0], [0, 0, 1, 0], [], []>} : vector<17x256xbf16>, vector<256x256xbf16>, vector<17x256xf32> -> vector<17x256xf32>
    %27 = vector.extract_strided_slice %26 {offsets = [16, 0], sizes = [1, 256], strides = [1, 1]} : vector<17x256xf32> to vector<1x256xf32>
    %28 = tpu.reciprocal %27 {approx = true} : vector<1x256xf32> -> vector<1x256xf32>
    %29 = vector.extract_strided_slice %26 {offsets = [0, 0], sizes = [16, 256], strides = [1, 1]} : vector<17x256xf32> to vector<16x256xf32>
    %30 = vector.broadcast %28 : vector<1x256xf32> to vector<16x256xf32>
    %31 = arith.mulf %29, %30 : vector<16x256xf32>
    %32 = arith.truncf %31 : vector<16x256xf32> to vector<16x256xbf16>
    %cst_15 = arith.constant dense<0.000000e+00> : vector<32x256xf32>
    %33 = tpu.matmul %4, %32, %cst_15 {dimension_numbers = #tpu.dot_dimension_numbers<[1], [0], [0], [1], [0, 0, 1, 1], [], []>} : vector<32x16xbf16>, vector<16x256xbf16>, vector<32x256xf32> -> vector<32x256xf32>
    %34 = vector.broadcast %5 : vector<32x1xf32> to vector<32x256xf32>
    %35 = arith.mulf %33, %34 : vector<32x256xf32>
    %36 = vector.broadcast %6 : vector<32x1xf32> to vector<32x256xf32>
    %37 = arith.addf %35, %36 : vector<32x256xf32>
    %38 = arith.addf %37, %8 : vector<32x256xf32>
    %c0_16 = arith.constant 0 : index
    %c0_17 = arith.constant 0 : index
    %c0_18 = arith.constant 0 : index
    %39 = vector.load %arg7[%c0_16, %c0_17, %c0_18] : memref<1x32x256xf32, #tpu.memory_space<vmem>>, vector<1x32x256xf32>
    %40 = vector.shape_cast %39 : vector<1x32x256xf32> to vector<32x256xf32>
    %41 = vector.shape_cast %38 : vector<32x256xf32> to vector<1x32x256xf32>
    tpu.vector_store %arg7[%c0_16, %c0_17, %c0_18], %41 {strides = array<i32>} : memref<1x32x256xf32, #tpu.memory_space<vmem>>, vector<1x32x256xf32>,
    return
  }
  func.func @transform_0(%arg0: i32) -> (i32, i32, i32) {
    %c0_i32 = arith.constant 0 : i32
    %c0_i32_0 = arith.constant 0 : i32
    %c0_i32_1 = arith.constant 0 : i32
    return %arg0, %c0_i32, %c0_i32_0 : i32, i32, i32
  }
  func.func @transform_1(%arg0: i32) -> (i32, i32) {
    %c0_i32 = arith.constant 0 : i32
    %c0_i32_0 = arith.constant 0 : i32
    %c0_i32_1 = arith.constant 0 : i32
    return %c0_i32, %c0_i32_0 : i32, i32
  }
  func.func @transform_2(%arg0: i32) -> (i32, i32) {
    %c0_i32 = arith.constant 0 : i32
    %c0_i32_0 = arith.constant 0 : i32
    %c0_i32_1 = arith.constant 0 : i32
    return %c0_i32, %c0_i32_0 : i32, i32
  }
  func.func @transform_3(%arg0: i32) -> (i32, i32) {
    %c0_i32 = arith.constant 0 : i32
    %c0_i32_0 = arith.constant 0 : i32
    %c0_i32_1 = arith.constant 0 : i32
    return %c0_i32, %c0_i32_0 : i32, i32
  }
  func.func @transform_4(%arg0: i32) -> (i32, i32) {
    %c0_i32 = arith.constant 0 : i32
    %c0_i32_0 = arith.constant 0 : i32
    %c0_i32_1 = arith.constant 0 : i32
    return %c0_i32, %c0_i32_0 : i32, i32
  }
  func.func @transform_5(%arg0: i32) -> (i32, i32) {
    %c0_i32 = arith.constant 0 : i32
    %c0_i32_0 = arith.constant 0 : i32
    %c0_i32_1 = arith.constant 0 : i32
    return %c0_i32, %c0_i32_0 : i32, i32
  }
  func.func @transform_6(%arg0: i32) -> (i32, i32, i32) {
    %c0_i32 = arith.constant 0 : i32
    %c0_i32_0 = arith.constant 0 : i32
    %c0_i32_1 = arith.constant 0 : i32
    return %arg0, %c0_i32, %c0_i32_0 : i32, i32, i32
  }
}

</mosaic_0001>

<llo_original>
// kernel: tpu_custom_call.1
$region0: #{tpu_custom_call.1}
  #allocation0 [shape = 'u32[]', space=smem, size = 0x4, offset = 0x4, fixed_abs, tag = 'smem constant byte address 0x4 - core index']
  #allocation1 [shape = 'u32[144,128]{1,0:T(1,128)}', space=vmem, size = 0x12000, scoped, tag = 'internal scratch']
  %s0 = inlined_call_operand.vmem [shape: f32[2,32,256], index: 0, kind: input, shape index: {}]
  %s1 = inlined_call_operand.vmem [shape: f32[49,32], index: 1, kind: input, shape index: {}]
  %s2 = inlined_call_operand.vmem [shape: f32[49,1], index: 2, kind: input, shape index: {}]
  %s3 = inlined_call_operand.vmem [shape: f32[32,16], index: 3, kind: input, shape index: {}]
  %s4 = inlined_call_operand.vmem [shape: f32[32,1], index: 4, kind: input, shape index: {}]
  %s5 = inlined_call_operand.vmem [shape: f32[32,1], index: 5, kind: input, shape index: {}]
  %s6 = inlined_call_operand.hbm [shape: f32[2,32,256], index: 6, kind: output, shape index: {}]
  %s7 = sld [smem:[#allocation0]]
  $region57: #{tpu_custom_call.1} parent=0
    _
  %s9 = ssub.s32 1, %s7
  %s10 = scalar_select 0, %s9, %s7
  $region1: #{tpu_custom_call.1} parent=0
    #allocation2 [shape = 'u8[65536]{0}', space=vmem, size = 0x10000, scoped, tag = 'output window, operand 0']
    #allocation3 [shape = 's32[2]{0}', space=sflag, size = 0x8, scoped, tag = 'scoped memory for tpu_custom_call.1']
    %11 = vsyncpa [#allocation3], 0
    %s12 = scalar_lea.sflag [#allocation3], 1
    %13 = vsyncpa %s12, 0
    loop: start=0, step=1, limit=4
    $region2: #{tpu_custom_call.1} parent=1 // loop_pre_header
      _
    $region3: #{tpu_custom_call.1} parent=1 // loop_header
      %s15 = sphi 0, %s19
      %p16 = scmp.ge.s32.totalorder %s15, 4
      %s25 = sphi 0, %s27
      %s28 = sphi 0, %s25
      %s29 = sphi 0, %s28
      %s45 = sphi 0, %s29
      %s49 = sphi 0, %s49
      %s51 = sphi 0, %s49
      %s52 = sphi 0, %s51
      %s66 = sphi 0, %s52
      %s70 = sphi 0, %s70
      %s72 = sphi 0, %s70
      %s73 = sphi 0, %s72
      %s87 = sphi 0, %s73
      %s91 = sphi 0, %s91
      %s93 = sphi 0, %s91
      %s94 = sphi 0, %s93
      %s108 = sphi 0, %s94
      %s112 = sphi 0, %s112
      %s114 = sphi 0, %s112
      %s115 = sphi 0, %s114
      %s129 = sphi 0, %s115
      %s133 = sphi 0, %s133
      %s135 = sphi 0, %s133
      %s136 = sphi 0, %s135
      %s150 = sphi 0, %s136
      %s156 = sphi 0, %s158
      %s159 = sphi 0, %s156
      %s160 = sphi 0, %s159
      %s176 = sphi 0, %s160
    $region4: #{tpu_custom_call.1} parent=1 // loop_header_branch
      %18 = sbr.rel (%p16) target = $region8
    $region5: #{tpu_custom_call.1} parent=1 // loop_body
      %s20 = ssub.s32 %s15, 1
      %s21 = ssub.s32 %s15, 2
      %s22 = sadd.s32 %s15, 1
      %s23 = ssub.s32 %s15, %s22
      %p24 = scmp.eq.s32.totalorder %s23, 0
      %s26 = sadd.s32 %s25, 1
      %s27 = scalar_select %p24, %s25, %s26
      %p30 = pneg %p24
      %p31 = scmp.eq.s32.totalorder %s15, 1
      %p32 = por %p30, %p31
      %p33 = scmp.ne.s32.totalorder %s25, %s28
      %p34 = scmp.eq.s32.totalorder %s15, 0
      %p35 = por %p33, %p34
      %p36 = scmp.ne.s32.totalorder %s25, %s28
      %p37 = scmp.eq.s32.totalorder %s20, 1
      %p38 = por %p36, %p37
      %p39 = scmp.ne.s32.totalorder %s28, %s29
      %p40 = scmp.eq.s32.totalorder %s20, 0
      %p41 = por %p39, %p40
      %p42 = scmp.ne.s32.totalorder %s28, %s29
      %p43 = scmp.eq.s32.totalorder %s21, 1
      %p44 = por %p42, %p43
      %p46 = scmp.ne.s32.totalorder %s29, %s45
      %p47 = scmp.eq.s32.totalorder %s21, 0
      %p48 = por %p46, %p47
      %s50 = sadd.s32 %s49, 1
      %p53 = scmp.eq.s32.totalorder %s15, 1
      %p54 = scmp.ne.s32.totalorder %s49, %s51
      %p55 = scmp.eq.s32.totalorder %s15, 0
      %p56 = por %p54, %p55
      %p57 = scmp.ne.s32.totalorder %s49, %s51
      %p58 = scmp.eq.s32.totalorder %s20, 1
      %p59 = por %p57, %p58
      %p60 = scmp.ne.s32.totalorder %s51, %s52
      %p61 = scmp.eq.s32.totalorder %s20, 0
      %p62 = por %p60, %p61
      %p63 = scmp.ne.s32.totalorder %s51, %s52
      %p64 = scmp.eq.s32.totalorder %s21, 1
      %p65 = por %p63, %p64
      %p67 = scmp.ne.s32.totalorder %s52, %s66
      %p68 = scmp.eq.s32.totalorder %s21, 0
      %p69 = por %p67, %p68
      %s71 = sadd.s32 %s70, 1
      %p74 = scmp.eq.s32.totalorder %s15, 1
      %p75 = scmp.ne.s32.totalorder %s70, %s72
      %p76 = scmp.eq.s32.totalorder %s15, 0
      %p77 = por %p75, %p76
      %p78 = scmp.ne.s32.totalorder %s70, %s72
      %p79 = scmp.eq.s32.totalorder %s20, 1
      %p80 = por %p78, %p79
      %p81 = scmp.ne.s32.totalorder %s72, %s73
      %p82 = scmp.eq.s32.totalorder %s20, 0
      %p83 = por %p81, %p82
      %p84 = scmp.ne.s32.totalorder %s72, %s73
      %p85 = scmp.eq.s32.totalorder %s21, 1
      %p86 = por %p84, %p85
      %p88 = scmp.ne.s32.totalorder %s73, %s87
      %p89 = scmp.eq.s32.totalorder %s21, 0
      %p90 = por %p88, %p89
      %s92 = sadd.s32 %s91, 1
      %p95 = scmp.eq.s32.totalorder %s15, 1
      %p96 = scmp.ne.s32.totalorder %s91, %s93
      %p97 = scmp.eq.s32.totalorder %s15, 0
      %p98 = por %p96, %p97
      %p99 = scmp.ne.s32.totalorder %s91, %s93
      %p100 = scmp.eq.s32.totalorder %s20, 1
      %p101 = por %p99, %p100
      %p102 = scmp.ne.s32.totalorder %s93, %s94
      %p103 = scmp.eq.s32.totalorder %s20, 0
      %p104 = por %p102, %p103
      %p105 = scmp.ne.s32.totalorder %s93, %s94
      %p106 = scmp.eq.s32.totalorder %s21, 1
      %p107 = por %p105, %p106
      %p109 = scmp.ne.s32.totalorder %s94, %s108
      %p110 = scmp.eq.s32.totalorder %s21, 0
      %p111 = por %p109, %p110
      %s113 = sadd.s32 %s112, 1
      %p116 = scmp.eq.s32.totalorder %s15, 1
      %p117 = scmp.ne.s32.totalorder %s112, %s114
      %p118 = scmp.eq.s32.totalorder %s15, 0
      %p119 = por %p117, %p118
      %p120 = scmp.ne.s32.totalorder %s112, %s114
      %p121 = scmp.eq.s32.totalorder %s20, 1
      %p122 = por %p120, %p121
      %p123 = scmp.ne.s32.totalorder %s114, %s115
      %p124 = scmp.eq.s32.totalorder %s20, 0
      %p125 = por %p123, %p124
      %p126 = scmp.ne.s32.totalorder %s114, %s115
      %p127 = scmp.eq.s32.totalorder %s21, 1
      %p128 = por %p126, %p127
      %p130 = scmp.ne.s32.totalorder %s115, %s129
      %p131 = scmp.eq.s32.totalorder %s21, 0
      %p132 = por %p130, %p131
      %s134 = sadd.s32 %s133, 1
      %p137 = scmp.eq.s32.totalorder %s15, 1
      %p138 = scmp.ne.s32.totalorder %s133, %s135
      %p139 = scmp.eq.s32.totalorder %s15, 0
      %p140 = por %p138, %p139
      %p141 = scmp.ne.s32.totalorder %s133, %s135
      %p142 = scmp.eq.s32.totalorder %s20, 1
      %p143 = por %p141, %p142
      %p144 = scmp.ne.s32.totalorder %s135, %s136
      %p145 = scmp.eq.s32.totalorder %s20, 0
      %p146 = por %p144, %p145
      %p147 = scmp.ne.s32.totalorder %s135, %s136
      %p148 = scmp.eq.s32.totalorder %s21, 1
      %p149 = por %p147, %p148
      %p151 = scmp.ne.s32.totalorder %s136, %s150
      %p152 = scmp.eq.s32.totalorder %s21, 0
      %p153 = por %p151, %p152
      %s154 = ssub.s32 %s15, %s22
      %p155 = scmp.eq.s32.totalorder %s154, 0
      %s157 = sadd.s32 %s156, 1
      %s158 = scalar_select %p155, %s156, %s157
      %p161 = pneg %p155
      %p162 = scmp.eq.s32.totalorder %s15, 1
      %p163 = por %p161, %p162
      %p164 = scmp.ne.s32.totalorder %s156, %s159
      %p165 = scmp.eq.s32.totalorder %s15, 0
      %p166 = por %p164, %p165
      %p167 = scmp.ne.s32.totalorder %s156, %s159
      %p168 = scmp.eq.s32.totalorder %s20, 1
      %p169 = por %p167, %p168
      %p170 = scmp.ne.s32.totalorder %s159, %s160
      %p171 = scmp.eq.s32.totalorder %s20, 0
      %p172 = por %p170, %p171
      %p173 = scmp.ne.s32.totalorder %s159, %s160
      %p174 = scmp.eq.s32.totalorder %s21, 1
      %p175 = por %p173, %p174
      %p177 = scmp.ne.s32.totalorder %s160, %s176
      %p178 = scmp.eq.s32.totalorder %s21, 0
      %p179 = por %p177, %p178
      %p180 = scmp.le.s32.totalorder 1, %s15
      %p181 = scmp.lt.s32.totalorder %s15, 3
      %p182 = pnand %p180, %p181
      %p183 = pneg %p182
      // Predicated region
      $region9: #{tpu_custom_call.1} parent=5 // pred_check
        _
      $region10: #{tpu_custom_call.1} parent=5 // pred_check_branch
        %185 = sbr.rel (%p182) target = $region12
      $region11: #{tpu_custom_call.1} parent=5 // pred_region
        %s186 = ssub.s32 %s15, 1
        // Predicated region
        $region13: #{tpu_custom_call.1} parent=11 // pred_check
          %p187 = pneg %p62
        $region14: #{tpu_custom_call.1} parent=11 // pred_check_branch
          %189 = sbr.rel (%p187) target = $region16
        $region15: #{tpu_custom_call.1} parent=11 // pred_region
          _
        $region16: #{tpu_custom_call.1} parent=11 // pred_fallthru
          _
        // Predicated region
        $region17: #{tpu_custom_call.1} parent=11 // pred_check
          %p190 = pneg %p83
        $region18: #{tpu_custom_call.1} parent=11 // pred_check_branch
          %192 = sbr.rel (%p190) target = $region20
        $region19: #{tpu_custom_call.1} parent=11 // pred_region
          _
        $region20: #{tpu_custom_call.1} parent=11 // pred_fallthru
          _
        // Predicated region
        $region21: #{tpu_custom_call.1} parent=11 // pred_check
          %p193 = pneg %p104
        $region22: #{tpu_custom_call.1} parent=11 // pred_check_branch
          %195 = sbr.rel (%p193) target = $region24
        $region23: #{tpu_custom_call.1} parent=11 // pred_region
          _
        $region24: #{tpu_custom_call.1} parent=11 // pred_fallthru
          _
        // Predicated region
        $region25: #{tpu_custom_call.1} parent=11 // pred_check
          %p196 = pneg %p125
        $region26: #{tpu_custom_call.1} parent=11 // pred_check_branch
          %198 = sbr.rel (%p196) target = $region28
        $region27: #{tpu_custom_call.1} parent=11 // pred_region
          _
        $region28: #{tpu_custom_call.1} parent=11 // pred_fallthru
          _
        // Predicated region
        $region29: #{tpu_custom_call.1} parent=11 // pred_check
          %p199 = pneg %p146
        $region30: #{tpu_custom_call.1} parent=11 // pred_check_branch
          %201 = sbr.rel (%p199) target = $region32
        $region31: #{tpu_custom_call.1} parent=11 // pred_region
          _
        $region32: #{tpu_custom_call.1} parent=11 // pred_fallthru
          _
      $region12: #{tpu_custom_call.1} parent=5 // pred_fallthru
        _
      %p202 = scmp.lt.s32.totalorder %s15, 2
      // Predicated region
      $region33: #{tpu_custom_call.1} parent=5 // pred_check
        %p203 = pneg %p202
      $region34: #{tpu_custom_call.1} parent=5 // pred_check_branch
        %205 = sbr.rel (%p203) target = $region36
      $region35: #{tpu_custom_call.1} parent=5 // pred_region
        // Predicated region
        $region37: #{tpu_custom_call.1} parent=35 // pred_check
          %p206 = pneg %p35
        $region38: #{tpu_custom_call.1} parent=35 // pred_check_branch
          %208 = sbr.rel (%p206) target = $region40
        $region39: #{tpu_custom_call.1} parent=35 // pred_region
          %p209 = scmp.lt.s32.totalorder %s15, 1
          %s210 = scalar_select %p209, %s15, 1
          %s211 = smul.addr %s210, 8
          %s212 = smul.addr %s211, 8
          %s213 = scalar_lea.vmem %s0, %s212
        $region40: #{tpu_custom_call.1} parent=35 // pred_fallthru
          _
      $region36: #{tpu_custom_call.1} parent=5 // pred_fallthru
        _
      %p214 = scmp.le.s32.totalorder 1, %s15
      %p215 = scmp.lt.s32.totalorder %s15, 3
      %p216 = pnand %p214, %p215
      %p217 = pneg %p216
      // Predicated region
      $region41: #{tpu_custom_call.1} parent=5 // pred_check
        _
      $region42: #{tpu_custom_call.1} parent=5 // pred_check_branch
        %219 = sbr.rel (%p216) target = $region44
      $region43: #{tpu_custom_call.1} parent=5 // pred_region
        %s220 = ssub.s32 %s15, 1
        %p221 = scmp.lt.s32.totalorder %s20, 1
        %s222 = scalar_select %p221, %s20, 1
        %s223 = smul.addr %s222, 8
        %s224 = smul.addr %s223, 8
        %s225 = scalar_lea.vmem %s0, %s224
        %p226 = pneg %p41
        %p227 = pneg %p38
        %p228 = pneg %p62
        %p229 = pneg %p59
        %p230 = pneg %p83
        %p231 = pneg %p80
        %p232 = pneg %p104
        %p233 = pneg %p101
        %p234 = pneg %p125
        %p235 = pneg %p122
        %p236 = pneg %p146
        %p237 = pneg %p143
        %p238 = pneg %p172
        %p239 = pneg %p169
        %s240 = sand.u32 %s159, 1
        %s241 = scalar_lea.sflag [#allocation3], %s240
        %s242 = sand.u32 %s159, 1
        %s243 = smul.addr %s242, 64
        %s244 = scalar_lea.vmem [#allocation2], %s243
        %p245 = scmp.lt.s32.totalorder %s20, 1
        %s246 = scalar_select %p245, %s20, 1
        %s247 = smul.addr %s246, 8
        %s248 = smul.addr %s247, 8
        %s249 = scalar_lea.vmem %s0, %s248
        %v251 = vld [vmem:[%s1] sm:$0xff]
        %v252 = vld [vmem:[%s1 + $0x8] sm:$0xff]
        %v253 = vld [vmem:[%s1 + $0x10] sm:$0xff]
        %v254 = vld [vmem:[%s1 + $0x18] sm:$0xff]
        %v255 = vld [vmem:[%s1 + $0x20] sm:$0xff]
        %v256 = vld [vmem:[%s1 + $0x28] sm:$0xff]
        %v257 = vld [vmem:[%s1 + $0x30] sm:$0x1]
        %v258 = vpack.c.bf16 %v252, %v251
        %v259 = vpack.c.bf16 %v254, %v253
        %v260 = vpack.c.bf16 %v256, %v255
        %v261 = vpack.c.bf16 %v257, %v257
        %v262 = vld [vmem:[%s2] sm:$0xff]
        %v263 = vld [vmem:[%s2 + $0x8] sm:$0xff]
        %v264 = vld [vmem:[%s2 + $0x10] sm:$0xff]
        %v265 = vld [vmem:[%s2 + $0x18] sm:$0xff]
        %v266 = vld [vmem:[%s2 + $0x20] sm:$0xff]
        %v267 = vld [vmem:[%s2 + $0x28] sm:$0xff]
        %v268 = vld [vmem:[%s2 + $0x30] sm:$0x1]
        %v269 = vld [vmem:[%s3] sm:$0xff]
        %v270 = vld [vmem:[%s3 + $0x8] sm:$0xff]
        %v271 = vld [vmem:[%s3 + $0x10] sm:$0xff]
        %v272 = vld [vmem:[%s3 + $0x18] sm:$0xff]
        %v273 = vpack.c.bf16 %v270, %v269
        %v274 = vpack.c.bf16 %v272, %v271
        %v275 = vld [vmem:[%s4] sm:$0xff]
        %v276 = vld [vmem:[%s4 + $0x8] sm:$0xff]
        %v277 = vld [vmem:[%s4 + $0x10] sm:$0xff]
        %v278 = vld [vmem:[%s4 + $0x18] sm:$0xff]
        %v279 = vld [vmem:[%s5] sm:$0xff]
        %v280 = vld [vmem:[%s5 + $0x8] sm:$0xff]
        %v281 = vld [vmem:[%s5 + $0x10] sm:$0xff]
        %v282 = vld [vmem:[%s5 + $0x18] sm:$0xff]
        %v283 = vld [vmem:[%s249] sm:$0xff]
        %v284 = vld [vmem:[%s249 + $0x8] sm:$0xff]
        %v285 = vld [vmem:[%s249 + $0x10] sm:$0xff]
        %v286 = vld [vmem:[%s249 + $0x18] sm:$0xff]
        %v287 = vld [vmem:[%s249 + $0x20] sm:$0xff]
        %v288 = vld [vmem:[%s249 + $0x28] sm:$0xff]
        %v289 = vld [vmem:[%s249 + $0x30] sm:$0xff]
        %v290 = vld [vmem:[%s249 + $0x38] sm:$0xff]
        %v291 = vpack.c.bf16 %v285, %v283
        %v292 = vpack.c.bf16 %v286, %v284
        %v293 = vpack.c.bf16 %v289, %v287
        %v294 = vpack.c.bf16 %v290, %v288
        %296 = vset.pattern.permute.xlu0 0
        %297 = vperm.xlu0 %296, %v262
        %v298 = vpop.permute.xlu0 %297
        %301 = vset.pattern.permute.xlu0 0
        %302 = vperm.xlu0 %301, %v263
        %v303 = vpop.permute.xlu0 %302
        %306 = vset.pattern.permute.xlu0 0
        %307 = vperm.xlu0 %306, %v264
        %v308 = vpop.permute.xlu0 %307
        %311 = vset.pattern.permute.xlu0 0
        %312 = vperm.xlu0 %311, %v265
        %v313 = vpop.permute.xlu0 %312
        %316 = vset.pattern.permute.xlu0 0
        %317 = vperm.xlu0 %316, %v266
        %v318 = vpop.permute.xlu0 %317
        %321 = vset.pattern.permute.xlu0 0
        %322 = vperm.xlu0 %321, %v267
        %v323 = vpop.permute.xlu0 %322
        %326 = vset.pattern.permute.xlu0 0
        %327 = vperm.xlu0 %326, %v268
        %v328 = vpop.permute.xlu0 %327
        %vm330 = vcmask 261120
        %v332 = vsel %vm330, %v258, 0
        %v335 = vsel %vm330, %v259, 0
        %v338 = vsel %vm330, %v260, 0
        %v341 = vsel %vm330, %v261, 0
        %343 = vmatprep.subr.bf16.mxu0 %v292
        %344 = vmatpush1.bf16.msra.mxu0 %v291
        %345 = vmatprep.subr.bf16.mxu0 %v294
        %346 = vmatpush1.bf16.msra.mxu0 %v293
        %347 = vmatprep.subr.bf16.mxu0 0
        %348 = vmatpush1.bf16.msra.mxu0 0
        %349 = vmatprep.subr.bf16.mxu0 0
        %350 = vmatpush1.bf16.msra.mxu0 0
        %351 = vmatprep.subr.bf16.mxu0 0
        %352 = vmatpush1.bf16.msra.mxu0 0
        %353 = vmatprep.subr.bf16.mxu0 0
        %354 = vmatpush1.bf16.msra.mxu0 0
        %355 = vmatprep.subr.bf16.mxu0 0
        %356 = vmatpush1.bf16.msra.mxu0 0
        %357 = vmatprep.subr.bf16.mxu0 0
        %358 = vmatpush1.bf16.msra.mxu0 0
        %359 = vmatprep.subr.bf16.mxu0 0
        %360 = vmatpush1.bf16.msra.mxu0 0
        %361 = vmatprep.subr.bf16.mxu0 0
        %362 = vmatpush1.bf16.msra.mxu0 0
        %363 = vmatprep.subr.bf16.mxu0 0
        %364 = vmatpush1.bf16.msra.mxu0 0
        %365 = vmatprep.subr.bf16.mxu0 0
        %366 = vmatpush1.bf16.msra.mxu0 0
        %367 = vmatprep.subr.bf16.mxu0 0
        %368 = vmatpush1.bf16.msra.mxu0 0
        %369 = vmatprep.subr.bf16.mxu0 0
        %370 = vmatpush1.bf16.msra.mxu0 0
        %371 = vmatprep.subr.bf16.mxu0 0
        %372 = vmatpush1.bf16.msra.mxu0 0
        %373 = vmatprep.subr.bf16.mxu0 0
        %374 = vmatpush1.bf16.msra.mxu0 0
        %375 = vmatprep.mubr.bf16.mxu0 0
        %376 = vmatmul.mubr.bf16.gmra.mrb[0].mxu0 %v332
        %v377 = vpop.f32.mrb[0].mxu0
        %v378 = vadd.f32 %v298, %v377
        %v379 = vpop.f32.mrb[0].mxu0
        %v380 = vadd.f32 %v298, %v379
        %v381 = vpop.f32.mrb[0].mxu0
        %v382 = vadd.f32 %v303, %v381
        %v383 = vpop.f32.mrb[0].mxu0
        %v384 = vadd.f32 %v303, %v383
        %385 = vmatprep.mubr.bf16.mxu0 0
        %386 = vmatmul.mubr.bf16.gmra.mrb[0].mxu0 %v335
        %v387 = vpop.f32.mrb[0].mxu0
        %v388 = vadd.f32 %v308, %v387
        %v389 = vpop.f32.mrb[0].mxu0
        %v390 = vadd.f32 %v308, %v389
        %v391 = vpop.f32.mrb[0].mxu0
        %v392 = vadd.f32 %v313, %v391
        %v393 = vpop.f32.mrb[0].mxu0
        %v394 = vadd.f32 %v313, %v393
        %395 = vmatprep.mubr.bf16.mxu0 0
        %396 = vmatmul.mubr.bf16.gmra.mrb[0].mxu0 %v338
        %v397 = vpop.f32.mrb[0].mxu0
        %v398 = vadd.f32 %v318, %v397
        %v399 = vpop.f32.mrb[0].mxu0
        %v400 = vadd.f32 %v318, %v399
        %v401 = vpop.f32.mrb[0].mxu0
        %v402 = vadd.f32 %v323, %v401
        %v403 = vpop.f32.mrb[0].mxu0
        %v404 = vadd.f32 %v323, %v403
        %405 = vmatprep.mubr.bf16.mxu0 0
        %406 = vmatmul.mubr.bf16.gmra.mrb[0].mxu0 %v341
        %v407 = vpop.f32.mrb[0].mxu0
        %v408 = vadd.f32 %v328, %v407
        %v409 = vpop.f32.mrb[0].mxu0
        %v410 = vadd.f32 %v328, %v409
        %v411 = vpop.f32.mrb[0].mxu0
        %v412 = vpop.f32.mrb[0].mxu0
        %413 = vdwg.mxu0
        %v414 = vpack.c.bf16 %v382, %v378
        %v415 = vpack.c.bf16 %v384, %v380
        %v416 = vpack.c.bf16 %v392, %v388
        %v417 = vpack.c.bf16 %v394, %v390
        %418 = vxpose.xlu0.c.b16.start [1/8] %v414, 128
        %419 = vxpose.xlu0.c.b16.cont [2/8] 0, 128
        %420 = vxpose.xlu0.c.b16.cont [3/8] 0, 128
        %421 = vxpose.xlu0.c.b16.cont [4/8] 0, 128
        %422 = vxpose.xlu0.c.b16.cont [5/8] 0, 128
        %423 = vxpose.xlu0.c.b16.cont [6/8] 0, 128
        %424 = vxpose.xlu0.c.b16.cont [7/8] 0, 128
        %425 = vxpose.xlu0.c.b16.end [8/8] 0, 128
        %v426 = vpop.trf.xlu0
        %v427 = vpop.trf.xlu0
        %v428 = vpop.trf.xlu0
        %v429 = vpop.trf.xlu0
        %v430 = vpop.trf.xlu0
        %v431 = vpop.trf.xlu0
        %v432 = vpop.trf.xlu0
        %v433 = vpop.trf.xlu0
        %434 = vxpose.xlu0.c.b16.start [1/8] %v415, 128
        %435 = vxpose.xlu0.c.b16.cont [2/8] 0, 128
        %436 = vxpose.xlu0.c.b16.cont [3/8] 0, 128
        %437 = vxpose.xlu0.c.b16.cont [4/8] 0, 128
        %438 = vxpose.xlu0.c.b16.cont [5/8] 0, 128
        %439 = vxpose.xlu0.c.b16.cont [6/8] 0, 128
        %440 = vxpose.xlu0.c.b16.cont [7/8] 0, 128
        %441 = vxpose.xlu0.c.b16.end [8/8] 0, 128
        %v442 = vpop.trf.xlu0
        %v443 = vpop.trf.xlu0
        %v444 = vpop.trf.xlu0
        %v445 = vpop.trf.xlu0
        %v446 = vpop.trf.xlu0
        %v447 = vpop.trf.xlu0
        %v448 = vpop.trf.xlu0
        %v449 = vpop.trf.xlu0
        %vm450 = vcmask 130048
        %v452 = vsel %vm450, %v426, 0
        %v455 = vsel %vm450, %v427, 0
        %v458 = vsel %vm450, %v428, 0
        %v461 = vsel %vm450, %v429, 0
        %v464 = vsel %vm450, %v430, 0
        %v467 = vsel %vm450, %v431, 0
        %v470 = vsel %vm450, %v432, 0
        %v473 = vsel %vm450, %v433, 0
        %v476 = vsel %vm450, %v442, 0
        %v479 = vsel %vm450, %v443, 0
        %v482 = vsel %vm450, %v444, 0
        %v485 = vsel %vm450, %v445, 0
        %v488 = vsel %vm450, %v446, 0
        %v491 = vsel %vm450, %v447, 0
        %v494 = vsel %vm450, %v448, 0
        %v497 = vsel %vm450, %v449, 0
        %499 = vmatprep.subr.bf16.mxu0 %v417
        %500 = vmatpush1.bf16.msra.mxu0 %v416
        %501 = vmatprep.subr.bf16.mxu0 0
        %502 = vmatpush1.bf16.msra.mxu0 0
        %503 = vmatprep.subr.bf16.mxu0 0
        %504 = vmatpush1.bf16.msra.mxu0 0
        %505 = vmatprep.subr.bf16.mxu0 0
        %506 = vmatpush1.bf16.msra.mxu0 0
        %507 = vmatprep.subr.bf16.mxu0 0
        %508 = vmatpush1.bf16.msra.mxu0 0
        %509 = vmatprep.subr.bf16.mxu0 0
        %510 = vmatpush1.bf16.msra.mxu0 0
        %511 = vmatprep.subr.bf16.mxu0 0
        %512 = vmatpush1.bf16.msra.mxu0 0
        %513 = vmatprep.subr.bf16.mxu0 0
        %514 = vmatpush1.bf16.msra.mxu0 0
        %515 = vmatprep.subr.bf16.mxu0 0
        %516 = vmatpush1.bf16.msra.mxu0 0
        %517 = vmatprep.subr.bf16.mxu0 0
        %518 = vmatpush1.bf16.msra.mxu0 0
        %519 = vmatprep.subr.bf16.mxu0 0
        %520 = vmatpush1.bf16.msra.mxu0 0
        %521 = vmatprep.subr.bf16.mxu0 0
        %522 = vmatpush1.bf16.msra.mxu0 0
        %523 = vmatprep.subr.bf16.mxu0 0
        %524 = vmatpush1.bf16.msra.mxu0 0
        %525 = vmatprep.subr.bf16.mxu0 0
        %526 = vmatpush1.bf16.msra.mxu0 0
        %527 = vmatprep.subr.bf16.mxu0 0
        %528 = vmatpush1.bf16.msra.mxu0 0
        %529 = vmatprep.subr.bf16.mxu0 0
        %530 = vmatpush1.bf16.msra.mxu0 0
        %531 = vmatprep.mubr.bf16.mxu0 0
        %532 = vmatmul.mubr.bf16.gmra.mrb[0].mxu0 %v452
        %v533 = vpop.f32.mrb[0].mxu0
        %v534 = vadd.f32 0.0, %v533
        %v535 = vpop.f32.mrb[0].mxu0
        %v536 = vadd.f32 0.0, %v535
        %v537 = vpop.f32.mrb[0].mxu0
        %v538 = vadd.f32 0.0, %v537
        %v539 = vpop.f32.mrb[0].mxu0
        %v540 = vadd.f32 0.0, %v539
        %541 = vmatprep.mubr.bf16.mxu0 0
        %542 = vmatmul.mubr.bf16.gmra.mrb[0].mxu0 %v455
        %v543 = vpop.f32.mrb[0].mxu0
        %v544 = vadd.f32 0.0, %v543
        %v545 = vpop.f32.mrb[0].mxu0
        %v546 = vadd.f32 0.0, %v545
        %v547 = vpop.f32.mrb[0].mxu0
        %v548 = vadd.f32 0.0, %v547
        %v549 = vpop.f32.mrb[0].mxu0
        %v550 = vadd.f32 0.0, %v549
        %551 = vmatprep.mubr.bf16.mxu0 0
        %552 = vmatmul.mubr.bf16.gmra.mrb[0].mxu0 %v458
        %v553 = vpop.f32.mrb[0].mxu0
        %v554 = vadd.f32 0.0, %v553
        %v555 = vpop.f32.mrb[0].mxu0
        %v556 = vadd.f32 0.0, %v555
        %v557 = vpop.f32.mrb[0].mxu0
        %v558 = vadd.f32 0.0, %v557
        %v559 = vpop.f32.mrb[0].mxu0
        %v560 = vadd.f32 0.0, %v559
        %561 = vmatprep.mubr.bf16.mxu0 0
        %562 = vmatmul.mubr.bf16.gmra.mrb[0].mxu0 %v461
        %v563 = vpop.f32.mrb[0].mxu0
        %v564 = vadd.f32 0.0, %v563
        %v565 = vpop.f32.mrb[0].mxu0
        %v566 = vadd.f32 0.0, %v565
        %v567 = vpop.f32.mrb[0].mxu0
        %v568 = vadd.f32 0.0, %v567
        %v569 = vpop.f32.mrb[0].mxu0
        %v570 = vadd.f32 0.0, %v569
        %571 = vmatprep.mubr.bf16.mxu0 0
        %572 = vmatmul.mubr.bf16.gmra.mrb[0].mxu0 %v464
        %v573 = vpop.f32.mrb[0].mxu0
        %v574 = vadd.f32 0.0, %v573
        %v575 = vpop.f32.mrb[0].mxu0
        %v576 = vadd.f32 0.0, %v575
        %v577 = vpop.f32.mrb[0].mxu0
        %v578 = vadd.f32 0.0, %v577
        %v579 = vpop.f32.mrb[0].mxu0
        %v580 = vadd.f32 0.0, %v579
        %581 = vmatprep.mubr.bf16.mxu0 0
        %582 = vmatmul.mubr.bf16.gmra.mrb[0].mxu0 %v467
        %v583 = vpop.f32.mrb[0].mxu0
        %v584 = vadd.f32 0.0, %v583
        %v585 = vpop.f32.mrb[0].mxu0
        %v586 = vadd.f32 0.0, %v585
        %v587 = vpop.f32.mrb[0].mxu0
        %v588 = vadd.f32 0.0, %v587
        %v589 = vpop.f32.mrb[0].mxu0
        %v590 = vadd.f32 0.0, %v589
        %591 = vmatprep.mubr.bf16.mxu0 0
        %592 = vmatmul.mubr.bf16.gmra.mrb[0].mxu0 %v470
        %v593 = vpop.f32.mrb[0].mxu0
        %v594 = vadd.f32 0.0, %v593
        %v595 = vpop.f32.mrb[0].mxu0
        %v596 = vadd.f32 0.0, %v595
        %v597 = vpop.f32.mrb[0].mxu0
        %v598 = vadd.f32 0.0, %v597
        %v599 = vpop.f32.mrb[0].mxu0
        %v600 = vadd.f32 0.0, %v599
        %601 = vmatprep.mubr.bf16.mxu0 0
        %602 = vmatmul.mubr.bf16.gmra.mrb[0].mxu0 %v473
        %v603 = vpop.f32.mrb[0].mxu0
        %v604 = vadd.f32 0.0, %v603
        %v605 = vpop.f32.mrb[0].mxu0
        %v606 = vadd.f32 0.0, %v605
        %v607 = vpop.f32.mrb[0].mxu0
        %v608 = vadd.f32 0.0, %v607
        %v609 = vpop.f32.mrb[0].mxu0
        %v610 = vadd.f32 0.0, %v609
        %611 = vmatprep.mubr.bf16.mxu0 0
        %612 = vmatmul.mubr.bf16.gmra.mrb[0].mxu0 %v476
        %v613 = vpop.f32.mrb[0].mxu0
        %v614 = vadd.f32 0.0, %v613
        %v615 = vpop.f32.mrb[0].mxu0
        %v616 = vadd.f32 0.0, %v615
        %v617 = vpop.f32.mrb[0].mxu0
        %v618 = vadd.f32 0.0, %v617
        %v619 = vpop.f32.mrb[0].mxu0
        %v620 = vadd.f32 0.0, %v619
        %621 = vmatprep.mubr.bf16.mxu0 0
        %622 = vmatmul.mubr.bf16.gmra.mrb[0].mxu0 %v479
        %v623 = vpop.f32.mrb[0].mxu0
        %v624 = vadd.f32 0.0, %v623
        %v625 = vpop.f32.mrb[0].mxu0
        %v626 = vadd.f32 0.0, %v625
        %v627 = vpop.f32.mrb[0].mxu0
        %v628 = vadd.f32 0.0, %v627
        %v629 = vpop.f32.mrb[0].mxu0
        %v630 = vadd.f32 0.0, %v629
        %631 = vmatprep.mubr.bf16.mxu0 0
        %632 = vmatmul.mubr.bf16.gmra.mrb[0].mxu0 %v482
        %v633 = vpop.f32.mrb[0].mxu0
        %v634 = vadd.f32 0.0, %v633
        %v635 = vpop.f32.mrb[0].mxu0
        %v636 = vadd.f32 0.0, %v635
        %v637 = vpop.f32.mrb[0].mxu0
        %v638 = vadd.f32 0.0, %v637
        %v639 = vpop.f32.mrb[0].mxu0
        %v640 = vadd.f32 0.0, %v639
        %641 = vmatprep.mubr.bf16.mxu0 0
        %642 = vmatmul.mubr.bf16.gmra.mrb[0].mxu0 %v485
        %v643 = vpop.f32.mrb[0].mxu0
        %v644 = vadd.f32 0.0, %v643
        %v645 = vpop.f32.mrb[0].mxu0
        %v646 = vadd.f32 0.0, %v645
        %v647 = vpop.f32.mrb[0].mxu0
        %v648 = vadd.f32 0.0, %v647
        %v649 = vpop.f32.mrb[0].mxu0
        %v650 = vadd.f32 0.0, %v649
        %651 = vmatprep.mubr.bf16.mxu0 0
        %652 = vmatmul.mubr.bf16.gmra.mrb[0].mxu0 %v488
        %v653 = vpop.f32.mrb[0].mxu0
        %v654 = vadd.f32 0.0, %v653
        %v655 = vpop.f32.mrb[0].mxu0
        %v656 = vadd.f32 0.0, %v655
        %v657 = vpop.f32.mrb[0].mxu0
        %v658 = vadd.f32 0.0, %v657
        %v659 = vpop.f32.mrb[0].mxu0
        %v660 = vadd.f32 0.0, %v659
        %661 = vmatprep.mubr.bf16.mxu0 0
        %662 = vmatmul.mubr.bf16.gmra.mrb[0].mxu0 %v491
        %v663 = vpop.f32.mrb[0].mxu0
        %v664 = vadd.f32 0.0, %v663
        %v665 = vpop.f32.mrb[0].mxu0
        %v666 = vadd.f32 0.0, %v665
        %v667 = vpop.f32.mrb[0].mxu0
        %v668 = vadd.f32 0.0, %v667
        %v669 = vpop.f32.mrb[0].mxu0
        %v670 = vadd.f32 0.0, %v669
        %671 = vmatprep.mubr.bf16.mxu0 0
        %672 = vmatmul.mubr.bf16.gmra.mrb[0].mxu0 %v494
        %v673 = vpop.f32.mrb[0].mxu0
        %v674 = vadd.f32 0.0, %v673
        %v675 = vpop.f32.mrb[0].mxu0
        %v676 = vadd.f32 0.0, %v675
        %v677 = vpop.f32.mrb[0].mxu0
        %v678 = vadd.f32 0.0, %v677
        %v679 = vpop.f32.mrb[0].mxu0
        %v680 = vadd.f32 0.0, %v679
        %681 = vmatprep.mubr.bf16.mxu0 0
        %682 = vmatmul.mubr.bf16.gmra.mrb[0].mxu0 %v497
        %v683 = vpop.f32.mrb[0].mxu0
        %v684 = vadd.f32 0.0, %v683
        %v685 = vpop.f32.mrb[0].mxu0
        %v686 = vadd.f32 0.0, %v685
        %v687 = vpop.f32.mrb[0].mxu0
        %v688 = vadd.f32 0.0, %v687
        %v689 = vpop.f32.mrb[0].mxu0
        %v690 = vadd.f32 0.0, %v689
        %691 = vdwg.mxu0
        %v692 = vmax.f32 %v534, %v536
        %693 = vmax.xlane.f32.xlu0 %v692
        %v694 = vpop.xlane.xlu0 %693
        %v695 = vmax.f32 %v538, %v540
        %696 = vmax.xlane.f32.xlu0 %v695
        %v697 = vpop.xlane.xlu0 %696
        %v698 = vmax.f32 %v544, %v546
        %699 = vmax.xlane.f32.xlu0 %v698
        %v700 = vpop.xlane.xlu0 %699
        %v701 = vmax.f32 %v548, %v550
        %702 = vmax.xlane.f32.xlu0 %v701
        %v703 = vpop.xlane.xlu0 %702
        %v704 = vmax.f32 %v554, %v556
        %705 = vmax.xlane.f32.xlu0 %v704
        %v706 = vpop.xlane.xlu0 %705
        %v707 = vmax.f32 %v558, %v560
        %708 = vmax.xlane.f32.xlu0 %v707
        %v709 = vpop.xlane.xlu0 %708
        %v710 = vmax.f32 %v564, %v566
        %711 = vmax.xlane.f32.xlu0 %v710
        %v712 = vpop.xlane.xlu0 %711
        %v713 = vmax.f32 %v568, %v570
        %714 = vmax.xlane.f32.xlu0 %v713
        %v715 = vpop.xlane.xlu0 %714
        %v716 = vmax.f32 %v574, %v576
        %717 = vmax.xlane.f32.xlu0 %v716
        %v718 = vpop.xlane.xlu0 %717
        %v719 = vmax.f32 %v578, %v580
        %720 = vmax.xlane.f32.xlu0 %v719
        %v721 = vpop.xlane.xlu0 %720
        %v722 = vmax.f32 %v584, %v586
        %723 = vmax.xlane.f32.xlu0 %v722
        %v724 = vpop.xlane.xlu0 %723
        %v725 = vmax.f32 %v588, %v590
        %726 = vmax.xlane.f32.xlu0 %v725
        %v727 = vpop.xlane.xlu0 %726
        %v728 = vmax.f32 %v594, %v596
        %729 = vmax.xlane.f32.xlu0 %v728
        %v730 = vpop.xlane.xlu0 %729
        %v731 = vmax.f32 %v598, %v600
        %732 = vmax.xlane.f32.xlu0 %v731
        %v733 = vpop.xlane.xlu0 %732
        %v734 = vmax.f32 %v604, %v606
        %735 = vmax.xlane.f32.xlu0 %v734
        %v736 = vpop.xlane.xlu0 %735
        %v737 = vmax.f32 %v608, %v610
        %738 = vmax.xlane.f32.xlu0 %v737
        %v739 = vpop.xlane.xlu0 %738
        %v740 = vmax.f32 %v614, %v616
        %741 = vmax.xlane.f32.xlu0 %v740
        %v742 = vpop.xlane.xlu0 %741
        %v743 = vmax.f32 %v618, %v620
        %744 = vmax.xlane.f32.xlu0 %v743
        %v745 = vpop.xlane.xlu0 %744
        %v746 = vmax.f32 %v624, %v626
        %747 = vmax.xlane.f32.xlu0 %v746
        %v748 = vpop.xlane.xlu0 %747
        %v749 = vmax.f32 %v628, %v630
        %750 = vmax.xlane.f32.xlu0 %v749
        %v751 = vpop.xlane.xlu0 %750
        %v752 = vmax.f32 %v634, %v636
        %753 = vmax.xlane.f32.xlu0 %v752
        %v754 = vpop.xlane.xlu0 %753
        %v755 = vmax.f32 %v638, %v640
        %756 = vmax.xlane.f32.xlu0 %v755
        %v757 = vpop.xlane.xlu0 %756
        %v758 = vmax.f32 %v644, %v646
        %759 = vmax.xlane.f32.xlu0 %v758
        %v760 = vpop.xlane.xlu0 %759
        %v761 = vmax.f32 %v648, %v650
        %762 = vmax.xlane.f32.xlu0 %v761
        %v763 = vpop.xlane.xlu0 %762
        %v764 = vmax.f32 %v654, %v656
        %765 = vmax.xlane.f32.xlu0 %v764
        %v766 = vpop.xlane.xlu0 %765
        %v767 = vmax.f32 %v658, %v660
        %768 = vmax.xlane.f32.xlu0 %v767
        %v769 = vpop.xlane.xlu0 %768
        %v770 = vmax.f32 %v664, %v666
        %771 = vmax.xlane.f32.xlu0 %v770
        %v772 = vpop.xlane.xlu0 %771
        %v773 = vmax.f32 %v668, %v670
        %774 = vmax.xlane.f32.xlu0 %v773
        %v775 = vpop.xlane.xlu0 %774
        %v776 = vmax.f32 %v674, %v676
        %777 = vmax.xlane.f32.xlu0 %v776
        %v778 = vpop.xlane.xlu0 %777
        %v779 = vmax.f32 %v678, %v680
        %780 = vmax.xlane.f32.xlu0 %v779
        %v781 = vpop.xlane.xlu0 %780
        %v782 = vmax.f32 %v684, %v686
        %783 = vmax.xlane.f32.xlu0 %v782
        %v784 = vpop.xlane.xlu0 %783
        %v785 = vmax.f32 %v688, %v690
        %786 = vmax.xlane.f32.xlu0 %v785
        %v787 = vpop.xlane.xlu0 %786
        %v788 = vsub.f32 %v534, %v694
        %v789 = vsub.f32 %v536, %v694
        %v790 = vsub.f32 %v538, %v697
        %v791 = vsub.f32 %v540, %v697
        %v792 = vsub.f32 %v544, %v700
        %v793 = vsub.f32 %v546, %v700
        %v794 = vsub.f32 %v548, %v703
        %v795 = vsub.f32 %v550, %v703
        %v796 = vsub.f32 %v554, %v706
        %v797 = vsub.f32 %v556, %v706
        %v798 = vsub.f32 %v558, %v709
        %v799 = vsub.f32 %v560, %v709
        %v800 = vsub.f32 %v564, %v712
        %v801 = vsub.f32 %v566, %v712
        %v802 = vsub.f32 %v568, %v715
        %v803 = vsub.f32 %v570, %v715
        %v804 = vsub.f32 %v574, %v718
        %v805 = vsub.f32 %v576, %v718
        %v806 = vsub.f32 %v578, %v721
        %v807 = vsub.f32 %v580, %v721
        %v808 = vsub.f32 %v584, %v724
        %v809 = vsub.f32 %v586, %v724
        %v810 = vsub.f32 %v588, %v727
        %v811 = vsub.f32 %v590, %v727
        %v812 = vsub.f32 %v594, %v730
        %v813 = vsub.f32 %v596, %v730
        %v814 = vsub.f32 %v598, %v733
        %v815 = vsub.f32 %v600, %v733
        %v816 = vsub.f32 %v604, %v736
        %v817 = vsub.f32 %v606, %v736
        %v818 = vsub.f32 %v608, %v739
        %v819 = vsub.f32 %v610, %v739
        %v820 = vsub.f32 %v614, %v742
        %v821 = vsub.f32 %v616, %v742
        %v822 = vsub.f32 %v618, %v745
        %v823 = vsub.f32 %v620, %v745
        %v824 = vsub.f32 %v624, %v748
        %v825 = vsub.f32 %v626, %v748
        %v826 = vsub.f32 %v628, %v751
        %v827 = vsub.f32 %v630, %v751
        %v828 = vsub.f32 %v634, %v754
        %v829 = vsub.f32 %v636, %v754
        %v830 = vsub.f32 %v638, %v757
        %v831 = vsub.f32 %v640, %v757
        %v832 = vsub.f32 %v644, %v760
        %v833 = vsub.f32 %v646, %v760
        %v834 = vsub.f32 %v648, %v763
        %v835 = vsub.f32 %v650, %v763
        %v836 = vsub.f32 %v654, %v766
        %v837 = vsub.f32 %v656, %v766
        %v838 = vsub.f32 %v658, %v769
        %v839 = vsub.f32 %v660, %v769
        %v840 = vsub.f32 %v664, %v772
        %v841 = vsub.f32 %v666, %v772
        %v842 = vsub.f32 %v668, %v775
        %v843 = vsub.f32 %v670, %v775
        %v844 = vsub.f32 %v674, %v778
        %v845 = vsub.f32 %v676, %v778
        %v846 = vsub.f32 %v678, %v781
        %v847 = vsub.f32 %v680, %v781
        %v848 = vsub.f32 %v684, %v784
        %v849 = vsub.f32 %v686, %v784
        %v850 = vsub.f32 %v688, %v787
        %v851 = vsub.f32 %v690, %v787
        %v852 = vmul.f32 %v788, 1.442695
        %v853 = vpow.pop %v852
        %v854 = vmul.f32 %v789, 1.442695
        %v855 = vpow.pop %v854
        %v856 = vmul.f32 %v790, 1.442695
        %v857 = vpow.pop %v856
        %v858 = vmul.f32 %v791, 1.442695
        %v859 = vpow.pop %v858
        %v860 = vmul.f32 %v792, 1.442695
        %v861 = vpow.pop %v860
        %v862 = vmul.f32 %v793, 1.442695
        %v863 = vpow.pop %v862
        %v864 = vmul.f32 %v794, 1.442695
        %v865 = vpow.pop %v864
        %v866 = vmul.f32 %v795, 1.442695
        %v867 = vpow.pop %v866
        %v868 = vmul.f32 %v796, 1.442695
        %v869 = vpow.pop %v868
        %v870 = vmul.f32 %v797, 1.442695
        %v871 = vpow.pop %v870
        %v872 = vmul.f32 %v798, 1.442695
        %v873 = vpow.pop %v872
        %v874 = vmul.f32 %v799, 1.442695
        %v875 = vpow.pop %v874
        %v876 = vmul.f32 %v800, 1.442695
        %v877 = vpow.pop %v876
        %v878 = vmul.f32 %v801, 1.442695
        %v879 = vpow.pop %v878
        %v880 = vmul.f32 %v802, 1.442695
        %v881 = vpow.pop %v880
        %v882 = vmul.f32 %v803, 1.442695
        %v883 = vpow.pop %v882
        %v884 = vmul.f32 %v804, 1.442695
        %v885 = vpow.pop %v884
        %v886 = vmul.f32 %v805, 1.442695
        %v887 = vpow.pop %v886
        %v888 = vmul.f32 %v806, 1.442695
        %v889 = vpow.pop %v888
        %v890 = vmul.f32 %v807, 1.442695
        %v891 = vpow.pop %v890
        %v892 = vmul.f32 %v808, 1.442695
        %v893 = vpow.pop %v892
        %v894 = vmul.f32 %v809, 1.442695
        %v895 = vpow.pop %v894
        %v896 = vmul.f32 %v810, 1.442695
        %v897 = vpow.pop %v896
        %v898 = vmul.f32 %v811, 1.442695
        %v899 = vpow.pop %v898
        %v900 = vmul.f32 %v812, 1.442695
        %v901 = vpow.pop %v900
        %v902 = vmul.f32 %v813, 1.442695
        %v903 = vpow.pop %v902
        %v904 = vmul.f32 %v814, 1.442695
        %v905 = vpow.pop %v904
        %v906 = vmul.f32 %v815, 1.442695
        %v907 = vpow.pop %v906
        %v908 = vmul.f32 %v816, 1.442695
        %v909 = vpow.pop %v908
        %v910 = vmul.f32 %v817, 1.442695
        %v911 = vpow.pop %v910
        %v912 = vmul.f32 %v818, 1.442695
        %v913 = vpow.pop %v912
        %v914 = vmul.f32 %v819, 1.442695
        %v915 = vpow.pop %v914
        %v916 = vmul.f32 %v820, 1.442695
        %v917 = vpow.pop %v916
        %v918 = vmul.f32 %v821, 1.442695
        %v919 = vpow.pop %v918
        %v920 = vmul.f32 %v822, 1.442695
        %v921 = vpow.pop %v920
        %v922 = vmul.f32 %v823, 1.442695
        %v923 = vpow.pop %v922
        %v924 = vmul.f32 %v824, 1.442695
        %v925 = vpow.pop %v924
        %v926 = vmul.f32 %v825, 1.442695
        %v927 = vpow.pop %v926
        %v928 = vmul.f32 %v826, 1.442695
        %v929 = vpow.pop %v928
        %v930 = vmul.f32 %v827, 1.442695
        %v931 = vpow.pop %v930
        %v932 = vmul.f32 %v828, 1.442695
        %v933 = vpow.pop %v932
        %v934 = vmul.f32 %v829, 1.442695
        %v935 = vpow.pop %v934
        %v936 = vmul.f32 %v830, 1.442695
        %v937 = vpow.pop %v936
        %v938 = vmul.f32 %v831, 1.442695
        %v939 = vpow.pop %v938
        %v940 = vmul.f32 %v832, 1.442695
        %v941 = vpow.pop %v940
        %v942 = vmul.f32 %v833, 1.442695
        %v943 = vpow.pop %v942
        %v944 = vmul.f32 %v834, 1.442695
        %v945 = vpow.pop %v944
        %v946 = vmul.f32 %v835, 1.442695
        %v947 = vpow.pop %v946
        %v948 = vmul.f32 %v836, 1.442695
        %v949 = vpow.pop %v948
        %v950 = vmul.f32 %v837, 1.442695
        %v951 = vpow.pop %v950
        %v952 = vmul.f32 %v838, 1.442695
        %v953 = vpow.pop %v952
        %v954 = vmul.f32 %v839, 1.442695
        %v955 = vpow.pop %v954
        %v956 = vmul.f32 %v840, 1.442695
        %v957 = vpow.pop %v956
        %v958 = vmul.f32 %v841, 1.442695
        %v959 = vpow.pop %v958
        %v960 = vmul.f32 %v842, 1.442695
        %v961 = vpow.pop %v960
        %v962 = vmul.f32 %v843, 1.442695
        %v963 = vpow.pop %v962
        %v964 = vmul.f32 %v844, 1.442695
        %v965 = vpow.pop %v964
        %v966 = vmul.f32 %v845, 1.442695
        %v967 = vpow.pop %v966
        %v968 = vmul.f32 %v846, 1.442695
        %v969 = vpow.pop %v968
        %v970 = vmul.f32 %v847, 1.442695
        %v971 = vpow.pop %v970
        %v972 = vmul.f32 %v848, 1.442695
        %v973 = vpow.pop %v972
        %v974 = vmul.f32 %v849, 1.442695
        %v975 = vpow.pop %v974
        %v976 = vmul.f32 %v850, 1.442695
        %v977 = vpow.pop %v976
        %v978 = vmul.f32 %v851, 1.442695
        %v979 = vpow.pop %v978
        %v980 = vpack.c.bf16 %v402, %v398
        %v981 = vpack.c.bf16 %v404, %v400
        %v982 = vpack.c.bf16 %v408, %v408
        %v983 = vpack.c.bf16 %v410, %v410
        %v984 = vpack.c.bf16 %v857, %v853
        %v985 = vpack.c.bf16 %v859, %v855
        %v986 = vpack.c.bf16 %v865, %v861
        %v987 = vpack.c.bf16 %v867, %v863
        %v988 = vpack.c.bf16 %v873, %v869
        %v989 = vpack.c.bf16 %v875, %v871
        %v990 = vpack.c.bf16 %v881, %v877
        %v991 = vpack.c.bf16 %v883, %v879
        %v992 = vpack.c.bf16 %v889, %v885
        %v993 = vpack.c.bf16 %v891, %v887
        %v994 = vpack.c.bf16 %v897, %v893
        %v995 = vpack.c.bf16 %v899, %v895
        %v996 = vpack.c.bf16 %v905, %v901
        %v997 = vpack.c.bf16 %v907, %v903
        %v998 = vpack.c.bf16 %v913, %v909
        %v999 = vpack.c.bf16 %v915, %v911
        %v1000 = vpack.c.bf16 %v921, %v917
        %v1001 = vpack.c.bf16 %v923, %v919
        %v1002 = vpack.c.bf16 %v929, %v925
        %v1003 = vpack.c.bf16 %v931, %v927
        %v1004 = vpack.c.bf16 %v937, %v933
        %v1005 = vpack.c.bf16 %v939, %v935
        %v1006 = vpack.c.bf16 %v945, %v941
        %v1007 = vpack.c.bf16 %v947, %v943
        %v1008 = vpack.c.bf16 %v953, %v949
        %v1009 = vpack.c.bf16 %v955, %v951
        %v1010 = vpack.c.bf16 %v961, %v957
        %v1011 = vpack.c.bf16 %v963, %v959
        %v1012 = vpack.c.bf16 %v969, %v965
        %v1013 = vpack.c.bf16 %v971, %v967
        %v1014 = vpack.c.bf16 %v977, %v973
        %v1015 = vpack.c.bf16 %v979, %v975
        %1016 = vmatprep.subr.bf16.mxu0 %v985
        %1017 = vmatpush1.bf16.xpose.msra.mxu0 %v984
        %1018 = vmatprep.subr.bf16.mxu0 %v987
        %1019 = vmatpush1.bf16.xpose.msra.mxu0 %v986
        %1020 = vmatprep.subr.bf16.mxu0 %v989
        %1021 = vmatpush1.bf16.xpose.msra.mxu0 %v988
        %1022 = vmatprep.subr.bf16.mxu0 %v991
        %1023 = vmatpush1.bf16.xpose.msra.mxu0 %v990
        %1024 = vmatprep.subr.bf16.mxu0 %v993
        %1025 = vmatpush1.bf16.xpose.msra.mxu0 %v992
        %1026 = vmatprep.subr.bf16.mxu0 %v995
        %1027 = vmatpush1.bf16.xpose.msra.mxu0 %v994
        %1028 = vmatprep.subr.bf16.mxu0 %v997
        %1029 = vmatpush1.bf16.xpose.msra.mxu0 %v996
        %1030 = vmatprep.subr.bf16.mxu0 %v999
        %1031 = vmatpush1.bf16.xpose.msra.mxu0 %v998
        %1032 = vmatprep.subr.bf16.mxu0 %v1001
        %1033 = vmatpush1.bf16.xpose.msra.mxu0 %v1000
        %1034 = vmatprep.subr.bf16.mxu0 %v1003
        %1035 = vmatpush1.bf16.xpose.msra.mxu0 %v1002
        %1036 = vmatprep.subr.bf16.mxu0 %v1005
        %1037 = vmatpush1.bf16.xpose.msra.mxu0 %v1004
        %1038 = vmatprep.subr.bf16.mxu0 %v1007
        %1039 = vmatpush1.bf16.xpose.msra.mxu0 %v1006
        %1040 = vmatprep.subr.bf16.mxu0 %v1009
        %1041 = vmatpush1.bf16.xpose.msra.mxu0 %v1008
        %1042 = vmatprep.subr.bf16.mxu0 %v1011
        %1043 = vmatpush1.bf16.xpose.msra.mxu0 %v1010
        %1044 = vmatprep.subr.bf16.mxu0 %v1013
        %1045 = vmatpush1.bf16.xpose.msra.mxu0 %v1012
        %1046 = vmatprep.subr.bf16.mxu0 %v1015
        %1047 = vmatpush1.bf16.xpose.msra.mxu0 %v1014
        %1048 = vmatprep.mubr.bf16.mxu0 %v981
        %1049 = vmatmul.mubr.bf16.gmra.mrb[0].mxu0 %v980
        %v1050 = vpop.f32.mrb[0].mxu0
        %v1051 = vadd.f32 0.0, %v1050
        %v1052 = vpop.f32.mrb[0].mxu0
        %v1053 = vadd.f32 0.0, %v1052
        %v1054 = vpop.f32.mrb[0].mxu0
        %v1055 = vadd.f32 0.0, %v1054
        %v1056 = vpop.f32.mrb[0].mxu0
        %v1057 = vadd.f32 0.0, %v1056
        %1058 = vmatprep.mubr.bf16.mxu0 %v983
        %1059 = vmatmul.mubr.bf16.gmra.mrb[0].mxu0 %v982
        %v1060 = vpop.f32.mrb[0].mxu0
        %v1061 = vadd.f32 0.0, %v1060
        %v1062 = vpop.f32.mrb[0].mxu0
        %v1063 = vadd.f32 0.0, %v1062
        %v1064 = vpop.f32.mrb[0].mxu0
        %v1065 = vpop.f32.mrb[0].mxu0
        %1066 = vdwg.mxu0
        %v1067 = vrcp.pop %v1061
        %v1068 = vrcp.pop %v1063
        %v1069 = vlaneseq
        %v1070 = vshrl.u32 %v1069, 7
        %v1071 = vsub.s32 0, %v1070
        %v1072 = vrot.slane %v1067, %v1071
        %v1073 = vlaneseq
        %v1074 = vshrl.u32 %v1073, 7
        %v1075 = vsub.s32 0, %v1074
        %v1076 = vrot.slane %v1068, %v1075
        %v1077 = vmul.f32 %v1051, %v1072
        %v1078 = vmul.f32 %v1053, %v1076
        %v1079 = vmul.f32 %v1055, %v1072
        %v1080 = vmul.f32 %v1057, %v1076
        %v1081 = vpack.c.bf16 %v1079, %v1077
        %v1082 = vpack.c.bf16 %v1080, %v1078
        %v1084 = vsel %vm450, %v273, 0
        %v1087 = vsel %vm450, %v274, 0
        %1089 = vmatprep.subr.bf16.mxu0 %v1082
        %1090 = vmatpush1.bf16.msra.mxu0 %v1081
        %1091 = vmatprep.subr.bf16.mxu0 0
        %1092 = vmatpush1.bf16.msra.mxu0 0
        %1093 = vmatprep.subr.bf16.mxu0 0
        %1094 = vmatpush1.bf16.msra.mxu0 0
        %1095 = vmatprep.subr.bf16.mxu0 0
        %1096 = vmatpush1.bf16.msra.mxu0 0
        %1097 = vmatprep.subr.bf16.mxu0 0
        %1098 = vmatpush1.bf16.msra.mxu0 0
        %1099 = vmatprep.subr.bf16.mxu0 0
        %1100 = vmatpush1.bf16.msra.mxu0 0
        %1101 = vmatprep.subr.bf16.mxu0 0
        %1102 = vmatpush1.bf16.msra.mxu0 0
        %1103 = vmatprep.subr.bf16.mxu0 0
        %1104 = vmatpush1.bf16.msra.mxu0 0
        %1105 = vmatprep.subr.bf16.mxu0 0
        %1106 = vmatpush1.bf16.msra.mxu0 0
        %1107 = vmatprep.subr.bf16.mxu0 0
        %1108 = vmatpush1.bf16.msra.mxu0 0
        %1109 = vmatprep.subr.bf16.mxu0 0
        %1110 = vmatpush1.bf16.msra.mxu0 0
        %1111 = vmatprep.subr.bf16.mxu0 0
        %1112 = vmatpush1.bf16.msra.mxu0 0
        %1113 = vmatprep.subr.bf16.mxu0 0
        %1114 = vmatpush1.bf16.msra.mxu0 0
        %1115 = vmatprep.subr.bf16.mxu0 0
        %1116 = vmatpush1.bf16.msra.mxu0 0
        %1117 = vmatprep.subr.bf16.mxu0 0
        %1118 = vmatpush1.bf16.msra.mxu0 0
        %1119 = vmatprep.subr.bf16.mxu0 0
        %1120 = vmatpush1.bf16.msra.mxu0 0
        %1121 = vmatprep.mubr.bf16.mxu0 0
        %1122 = vmatmul.mubr.bf16.gmra.mrb[0].mxu0 %v1084
        %v1123 = vpop.f32.mrb[0].mxu0
        %v1124 = vadd.f32 0.0, %v1123
        %v1125 = vpop.f32.mrb[0].mxu0
        %v1126 = vadd.f32 0.0, %v1125
        %v1127 = vpop.f32.mrb[0].mxu0
        %v1128 = vadd.f32 0.0, %v1127
        %v1129 = vpop.f32.mrb[0].mxu0
        %v1130 = vadd.f32 0.0, %v1129
        %1131 = vmatprep.mubr.bf16.mxu0 0
        %1132 = vmatmul.mubr.bf16.gmra.mrb[0].mxu0 %v1087
        %v1133 = vpop.f32.mrb[0].mxu0
        %v1134 = vadd.f32 0.0, %v1133
        %v1135 = vpop.f32.mrb[0].mxu0
        %v1136 = vadd.f32 0.0, %v1135
        %v1137 = vpop.f32.mrb[0].mxu0
        %v1138 = vadd.f32 0.0, %v1137
        %v1139 = vpop.f32.mrb[0].mxu0
        %v1140 = vadd.f32 0.0, %v1139
        %1141 = vdwg.mxu0
        %1143 = vset.pattern.permute.xlu0 0
        %1144 = vperm.xlu0 %1143, %v275
        %v1145 = vpop.permute.xlu0 %1144
        %1148 = vset.pattern.permute.xlu0 0
        %1149 = vperm.xlu0 %1148, %v276
        %v1150 = vpop.permute.xlu0 %1149
        %1153 = vset.pattern.permute.xlu0 0
        %1154 = vperm.xlu0 %1153, %v277
        %v1155 = vpop.permute.xlu0 %1154
        %1158 = vset.pattern.permute.xlu0 0
        %1159 = vperm.xlu0 %1158, %v278
        %v1160 = vpop.permute.xlu0 %1159
        %v1162 = vmul.f32 %v1124, %v1145
        %v1163 = vmul.f32 %v1126, %v1145
        %v1164 = vmul.f32 %v1128, %v1150
        %v1165 = vmul.f32 %v1130, %v1150
        %v1166 = vmul.f32 %v1134, %v1155
        %v1167 = vmul.f32 %v1136, %v1155
        %v1168 = vmul.f32 %v1138, %v1160
        %v1169 = vmul.f32 %v1140, %v1160
        %1171 = vset.pattern.permute.xlu0 0
        %1172 = vperm.xlu0 %1171, %v279
        %v1173 = vpop.permute.xlu0 %1172
        %1176 = vset.pattern.permute.xlu0 0
        %1177 = vperm.xlu0 %1176, %v280
        %v1178 = vpop.permute.xlu0 %1177
        %1181 = vset.pattern.permute.xlu0 0
        %1182 = vperm.xlu0 %1181, %v281
        %v1183 = vpop.permute.xlu0 %1182
        %1186 = vset.pattern.permute.xlu0 0
        %1187 = vperm.xlu0 %1186, %v282
        %v1188 = vpop.permute.xlu0 %1187
        %v1190 = vadd.f32 %v1162, %v1173
        %v1191 = vadd.f32 %v1163, %v1173
        %v1192 = vadd.f32 %v1164, %v1178
        %v1193 = vadd.f32 %v1165, %v1178
        %v1194 = vadd.f32 %v1166, %v1183
        %v1195 = vadd.f32 %v1167, %v1183
        %v1196 = vadd.f32 %v1168, %v1188
        %v1197 = vadd.f32 %v1169, %v1188
        %v1198 = vadd.f32 %v1190, %v283
        %v1199 = vadd.f32 %v1191, %v284
        %v1200 = vadd.f32 %v1192, %v285
        %v1201 = vadd.f32 %v1193, %v286
        %v1202 = vadd.f32 %v1194, %v287
        %v1203 = vadd.f32 %v1195, %v288
        %v1204 = vadd.f32 %v1196, %v289
        %v1205 = vadd.f32 %v1197, %v290
        %1206 = vst [vmem:[%s244] sm:$0xff] %v1198
        %1207 = vst [vmem:[%s244 + $0x8] sm:$0xff] %v1199
        %1208 = vst [vmem:[%s244 + $0x10] sm:$0xff] %v1200
        %1209 = vst [vmem:[%s244 + $0x18] sm:$0xff] %v1201
        %1210 = vst [vmem:[%s244 + $0x20] sm:$0xff] %v1202
        %1211 = vst [vmem:[%s244 + $0x28] sm:$0xff] %v1203
        %1212 = vst [vmem:[%s244 + $0x30] sm:$0xff] %v1204
        %1213 = vst [vmem:[%s244 + $0x38] sm:$0xff] %v1205
        %s1214 = sand.u32 %s159, 1
        %s1215 = scalar_lea.sflag [#allocation3], %s1214
        %s1216 = sand.u32 %s159, 1
        %s1217 = smul.addr %s1216, 64
        %s1218 = scalar_lea.vmem [#allocation2], %s1217
        // Predicated region
        $region45: #{tpu_custom_call.1} parent=43 // pred_check
          %p1219 = pneg %p169
        $region46: #{tpu_custom_call.1} parent=43 // pred_check_branch
          %1221 = sbr.rel (%p1219) target = $region48
        $region47: #{tpu_custom_call.1} parent=43 // pred_region
          %s1223 = ssub.s32 1024, 1024
          %1224 = vsyncadd %s1215, %s1223
          %s1225 = smul.addr %s20, 8
          %s1226 = smul.addr %s1225, 128
          %s1227 = scalar_lea.hbm %s6, %s1226
          %s1228 = sshll.u32 %s1218, 4
          %s1229 = int_to_ptr.vmem [resolvable:$true] %s1228
          %1234 = dma.vmem_to_hbm [thread:$0]  %s1229, 1024, %s1227, %s1215, 256, 256, 16
        $region48: #{tpu_custom_call.1} parent=43 // pred_fallthru
          _
      $region44: #{tpu_custom_call.1} parent=5 // pred_fallthru
        _
      %p1235 = scmp.le.s32.totalorder 2, %s15
      // Predicated region
      $region49: #{tpu_custom_call.1} parent=5 // pred_check
        %p1236 = pneg %p1235
      $region50: #{tpu_custom_call.1} parent=5 // pred_check_branch
        %1238 = sbr.rel (%p1236) target = $region52
      $region51: #{tpu_custom_call.1} parent=5 // pred_region
        %s1239 = ssub.s32 %s15, 2
        // Predicated region
        $region53: #{tpu_custom_call.1} parent=51 // pred_check
          %p1240 = pneg %p175
        $region54: #{tpu_custom_call.1} parent=51 // pred_check_branch
          %1242 = sbr.rel (%p1240) target = $region56
        $region55: #{tpu_custom_call.1} parent=51 // pred_region
          %s1243 = sand.u32 %s160, 1
          %s1244 = scalar_lea.sflag [#allocation3], %s1243
          %s1245 = sand.u32 %s160, 1
          %s1246 = smul.addr %s1245, 64
          %s1247 = scalar_lea.vmem [#allocation2], %s1246
          %1248 = dma.done %s1244, 1024
        $region56: #{tpu_custom_call.1} parent=51 // pred_fallthru
          _
      $region52: #{tpu_custom_call.1} parent=5 // pred_fallthru
        _
    $region6: #{tpu_custom_call.1} parent=1 // loop_footer
      %s19 = sadd.s32 1, %s15
    $region7: #{tpu_custom_call.1} parent=1 // loop_footer_branch
      %14 = sbr.rel target = $region3
    $region8: #{tpu_custom_call.1} parent=1 // loop_exit
      _
    %1249 = vsyncpa [#allocation3], 1
    %s1250 = scalar_lea.sflag [#allocation3], 1
    %1251 = vsyncpa %s1250, 1

</llo_original>
